<compile_context>
chip_gen: v7x
topology: tpu7x:2x2x1
jax: 0.10.0
libtpu: 0.0.40
codegen_flags: <defaults>
</compile_context>

<pallas_src>
import math

import jax
import jax.numpy as jnp
import numpy as np
from jax.experimental import pallas as pl
from jax.experimental.pallas import tpu as pltpu

_NEG_LARGE = -1e30


def _round_up(n, m):
    return ((n + m - 1) // m) * m


def _textcnn_fused_kernel(x_ref, w_ref, b_ref, mask_ref, o_ref):
    """Fused conv(all K) + mask + max-over-time + bias + ReLU.

    x_ref:    (Bt, T, KD)  bf16 im2col'd input (T = L - Kmin + 1, KD = Kmax*D)
    w_ref:    (KD, Cp)     bf16 stacked, zero-padded conv weights
    b_ref:    (1, Cp)      f32 bias (zero in padded channels)
    mask_ref: (T, Cp)      f32 additive mask (0 = valid position, -1e30 = invalid)
    o_ref:    (Bt, Cp)     f32 output
    """
    # Single MXU push: (Bt*T, KD) x (KD, Cp), f32 accumulation.
    acc = jax.lax.dot_general(
        x_ref[...], w_ref[...],
        dimension_numbers=(((2,), (0,)), ((), ())),
        preferred_element_type=jnp.float32)          # (Bt, T, Cp)

    # Kill invalid time positions per branch, then max-pool over time (XLU).
    acc = acc + mask_ref[...][None, :, :]
    pooled = jnp.max(acc, axis=1)                    # (Bt, Cp)

    # Bias + ReLU hoisted after the max: max_t relu(a_t + b) == relu(max_t a_t + b).
    o_ref[...] = jnp.maximum(pooled + b_ref[...], 0.0).astype(o_ref.dtype)


def init_params(key, in_channels, out_channels, kernel_sizes):
    """Torch-layout Conv2d params: w (C, 1, K, D), b (C,) with Conv2d init bounds."""
    params = []
    for K in kernel_sizes:
        key, kw, kb = jax.random.split(key, 3)
        fan_in = 1 * K * in_channels
        bound = 1.0 / math.sqrt(fan_in)
        w = jax.random.uniform(kw, (out_channels, 1, K, in_channels),
                               jnp.float32, -bound, bound)
        b = jax.random.uniform(kb, (out_channels,), jnp.float32, -bound, bound)
        params.append((w, b))
    return params


def prepare_fused_params(params, seq_len):
    """Pack per-branch torch-layout params into one fused weight/bias/mask set."""
    kernel_sizes = [int(w.shape[2]) for (w, _) in params]
    C = int(params[0][0].shape[0])
    D = int(params[0][0].shape[3])
    Kmax, Kmin = max(kernel_sizes), min(kernel_sizes)
    T = seq_len - Kmin + 1                       # positions covering every branch
    C_total = C * len(params)
    Cp = _round_up(C_total, 128)                 # lane-dense output width

    w_cols, b_cols = [], []
    for (w_t, b) in params:
        K = int(w_t.shape[2])
        w = jnp.transpose(w_t[:, 0, :, :], (1, 2, 0))        # (K, D, C)
        w = jnp.pad(w, ((0, Kmax - K), (0, 0), (0, 0)))      # zero taps -> (Kmax, D, C)
        w_cols.append(w)
        b_cols.append(b)
    W = jnp.concatenate(w_cols, axis=-1).reshape(Kmax * D, C_total)
    W = jnp.pad(W, ((0, 0), (0, Cp - C_total))).astype(jnp.bfloat16)
    bias = jnp.concatenate(b_cols, axis=0)
    bias = jnp.pad(bias, (0, Cp - C_total)).reshape(1, Cp).astype(jnp.float32)

    # Additive mask: branch with kernel K is only valid at t < L - K + 1.
    mask = np.zeros((T, Cp), np.float32)
    for bi, K in enumerate(kernel_sizes):
        t_valid = seq_len - K + 1
        if t_valid < T:
            mask[t_valid:, bi * C:(bi + 1) * C] = _NEG_LARGE
    mask = jnp.asarray(mask)

    meta = dict(kernel_sizes=kernel_sizes, Kmax=Kmax, Kmin=Kmin,
                T=T, D=D, C=C, C_total=C_total, Cp=Cp)
    return W, bias, mask, meta


def cnn_forward(x, fused, *, batch_tile=128):
    """x: (B, L, D) f32. Returns (B, C * num_kernel_sizes) f32."""
    W, bias, mask, meta = fused
    B, L, D = x.shape
    Kmax, Kmin = meta["Kmax"], meta["Kmin"]
    T, Cp, C_total = meta["T"], meta["Cp"], meta["C_total"]
    KD = Kmax * D

    # im2col once (pure layout transform, outside the kernel): (B, T, Kmax*D).
    # Rows beyond L only ever meet zero-padded weight taps at valid positions.
    x_pad = jnp.pad(x, ((0, 0), (0, Kmax - Kmin), (0, 0)))
    x_unf = jnp.concatenate([x_pad[:, k:k + T, :] for k in range(Kmax)], axis=-1)
    x_unf = x_unf.astype(jnp.bfloat16)           # bf16 MXU inputs, f32 accumulation

    # Batch-tiled grid (double-buffered pipeline for large B; trivial grid here).
    # NOTE: for very large L, additionally tile T inside the kernel with a
    # running max to bound the (Bt, T, Cp) accumulator (esp. v7x 64 MiB VMEM).
    Bt = min(B, batch_tile)
    grid = (pl.cdiv(B, Bt),)

    out = pl.pallas_call(
        _textcnn_fused_kernel,
        out_shape=jax.ShapeDtypeStruct((B, Cp), jnp.float32),
        grid=grid,
        in_specs=[
            pl.BlockSpec((Bt, T, KD), lambda i: (i, 0, 0)),   # batch-tiled input
            pl.BlockSpec((KD, Cp), lambda i: (0, 0)),         # weights: resident
            pl.BlockSpec((1, Cp), lambda i: (0, 0)),          # bias:    resident
            pl.BlockSpec((T, Cp), lambda i: (0, 0)),          # mask:    resident
        ],
        out_specs=pl.BlockSpec((Bt, Cp), lambda i: (i, 0)),
        compiler_params=pltpu.CompilerParams(
            dimension_semantics=("parallel",)),               # megacore-shardable
    )(x_unf, W, bias, mask)

    return out[:, :C_total]                                   # drop lane padding


def cnn_forward_ref(x, params):
    """Pure-JAX f32 reference of the PyTorch forward (for correctness check)."""
    B, L, D = x.shape
    outs = []
    for (w_t, b) in params:
        C, _, K, _ = w_t.shape
        w = jnp.transpose(w_t[:, 0, :, :], (1, 2, 0))   # (K, D, C)
        T = L - K + 1
        conv = jnp.zeros((B, T, C), jnp.float32)
        for k in range(K):
            conv = conv + jnp.einsum('btd,dc->btc', x[:, k:k + T, :], w[k])
        conv = jnp.maximum(conv + b[None, None, :], 0.0)
        outs.append(jnp.max(conv, axis=1))
    return jnp.concatenate(outs, axis=1)


if __name__ == "__main__":
    # Small shapes consistent with the module's forward: x is (B, L, D),
    # D == in_channels is the conv kernel's width.
    B, L = 2, 16
    in_channels = 8
    out_channels = 8
    kernel_sizes = [3, 4, 5]

    key = jax.random.PRNGKey(0)
    key, kx = jax.random.split(key)
    x = jax.random.normal(kx, (B, L, in_channels), jnp.float32)

    params = init_params(key, in_channels, out_channels, kernel_sizes)
    fused = prepare_fused_params(params, L)

    out = cnn_forward(x, fused)
    out = jax.block_until_ready(out)

    ref = cnn_forward_ref(x, params)
    assert out.shape == (B, out_channels * len(kernel_sizes)), out.shape
    # bf16 MXU inputs with f32 accumulation -> relaxed tolerance vs f32 reference.
    np.testing.assert_allclose(np.asarray(out), np.asarray(ref),
                               rtol=2e-2, atol=2e-2)
    print("KERNEL_OK")
</pallas_src>

<mosaic_0001>
module attributes {stable_mosaic.version = 11 : i64} {
  func.func @_textcnn_fused_kernel(%arg0: i32, %arg1: memref<2x14x40xbf16, #tpu.memory_space<vmem>>, %arg2: memref<40x128xbf16, #tpu.memory_space<vmem>>, %arg3: memref<1x128xf32, #tpu.memory_space<vmem>>, %arg4: memref<14x128xf32, #tpu.memory_space<vmem>>, %arg5: memref<2x128xf32, #tpu.memory_space<vmem>>) attributes {dimension_semantics = [#tpu.dimension_semantics<parallel>], iteration_bounds = array<i64: 1>, scalar_prefetch = 0 : i64, scratch_operands = 0 : i64, tpu.core_type = #tpu.core_type<tc>, window_params = [{transform_indices = @transform_0, window_bounds = array<i64: 2, 14, 40>}, {pipeline_mode = #tpu.pipeline_mode<synchronous>, transform_indices = @transform_1, window_bounds = array<i64: 40, 128>}, {pipeline_mode = #tpu.pipeline_mode<synchronous>, transform_indices = @transform_2, window_bounds = array<i64: 1, 128>}, {pipeline_mode = #tpu.pipeline_mode<synchronous>, transform_indices = @transform_3, window_bounds = array<i64: 14, 128>}, {transform_indices = @transform_4, window_bounds = array<i64: 2, 128>}]} {
    %c0 = arith.constant 0 : index
    %c0_0 = arith.constant 0 : index
    %c0_1 = arith.constant 0 : index
    %0 = vector.load %arg1[%c0, %c0_0, %c0_1] : memref<2x14x40xbf16, #tpu.memory_space<vmem>>, vector<2x14x40xbf16>
    %c0_2 = arith.constant 0 : index
    %c0_3 = arith.constant 0 : index
    %1 = vector.load %arg2[%c0_2, %c0_3] : memref<40x128xbf16, #tpu.memory_space<vmem>>, vector<40x128xbf16>
    %cst = arith.constant dense<0.000000e+00> : vector<2x14x128xf32>
    %2 = tpu.matmul %0, %1, %cst {dimension_numbers = #tpu.dot_dimension_numbers<[2], [0], [0, 1], [1], [0, 0, 0, 1, 1, 1], [], []>} : vector<2x14x40xbf16>, vector<40x128xbf16>, vector<2x14x128xf32> -> vector<2x14x128xf32>
    %c0_4 = arith.constant 0 : index
    %c0_5 = arith.constant 0 : index
    %3 = vector.load %arg4[%c0_4, %c0_5] : memref<14x128xf32, #tpu.memory_space<vmem>>, vector<14x128xf32>
    %4 = vector.shape_cast %3 : vector<14x128xf32> to vector<1x14x128xf32>
    %5 = vector.broadcast %4 : vector<1x14x128xf32> to vector<2x14x128xf32>
    %6 = arith.addf %2, %5 : vector<2x14x128xf32>
    %cst_6 = arith.constant dense<0xFF800000> : vector<2x128xf32>
    %7 = vector.multi_reduction <maximumf>, %6, %cst_6 [1] : vector<2x14x128xf32> to vector<2x128xf32>
    %c0_7 = arith.constant 0 : index
    %c0_8 = arith.constant 0 : index
    %8 = vector.load %arg3[%c0_7, %c0_8] : memref<1x128xf32, #tpu.memory_space<vmem>>, vector<1x128xf32>
    %9 = vector.broadcast %8 : vector<1x128xf32> to vector<2x128xf32>
    %10 = arith.addf %7, %9 : vector<2x128xf32>
    %cst_9 = arith.constant 0.000000e+00 : f32
    %11 = vector.broadcast %cst_9 : f32 to vector<2x128xf32>
    %12 = arith.maximumf %10, %11 : vector<2x128xf32>
    %c0_10 = arith.constant 0 : index
    %c0_11 = arith.constant 0 : index
    %13 = vector.load %arg5[%c0_10, %c0_11] : memref<2x128xf32, #tpu.memory_space<vmem>>, vector<2x128xf32>
    tpu.vector_store %arg5[%c0_10, %c0_11], %12 {strides = array<i32>} : memref<2x128xf32, #tpu.memory_space<vmem>>, vector<2x128xf32>,
    return
  }
  func.func @transform_0(%arg0: i32) -> (i32, i32, i32) {
    %c0_i32 = arith.constant 0 : i32
    %c0_i32_0 = arith.constant 0 : i32
    %c0_i32_1 = arith.constant 0 : i32
    return %arg0, %c0_i32, %c0_i32_0 : i32, i32, i32
  }
  func.func @transform_1(%arg0: i32) -> (i32, i32) {
    %c0_i32 = arith.constant 0 : i32
    %c0_i32_0 = arith.constant 0 : i32
    %c0_i32_1 = arith.constant 0 : i32
    return %c0_i32, %c0_i32_0 : i32, i32
  }
  func.func @transform_2(%arg0: i32) -> (i32, i32) {
    %c0_i32 = arith.constant 0 : i32
    %c0_i32_0 = arith.constant 0 : i32
    %c0_i32_1 = arith.constant 0 : i32
    return %c0_i32, %c0_i32_0 : i32, i32
  }
  func.func @transform_3(%arg0: i32) -> (i32, i32) {
    %c0_i32 = arith.constant 0 : i32
    %c0_i32_0 = arith.constant 0 : i32
    %c0_i32_1 = arith.constant 0 : i32
    return %c0_i32, %c0_i32_0 : i32, i32
  }
  func.func @transform_4(%arg0: i32) -> (i32, i32) {
    %c0_i32 = arith.constant 0 : i32
    %c0_i32_0 = arith.constant 0 : i32
    return %arg0, %c0_i32 : i32, i32
  }
}

</mosaic_0001>

<llo_original>
// kernel: tpu_custom_call.1
$region0: #{tpu_custom_call.1}
  #allocation0 [shape = 'u32[]', space=smem, size = 0x4, offset = 0x4, fixed_abs, tag = 'smem constant byte address 0x4 - core index']
  #allocation1 [shape = 'u32[144,128]{1,0:T(1,128)}', space=vmem, size = 0x12000, scoped, tag = 'internal scratch']
  %s0 = inlined_call_operand.vmem [shape: bf16[2,14,40], index: 0, kind: input, shape index: {}]
  %s1 = inlined_call_operand.vmem [shape: bf16[40,128], index: 1, kind: input, shape index: {}]
  %s2 = inlined_call_operand.vmem [shape: f32[1,128], index: 2, kind: input, shape index: {}]
  %s3 = inlined_call_operand.vmem [shape: f32[14,128], index: 3, kind: input, shape index: {}]
  %s4 = inlined_call_operand.hbm [shape: f32[2,128], index: 4, kind: output, shape index: {}]
  %s5 = sld [smem:[#allocation0]]
  $region26: #{tpu_custom_call.1} parent=0
    _
  %s7 = ssub.s32 1, %s5
  %s8 = scalar_select 0, %s7, %s5
  $region1: #{tpu_custom_call.1} parent=0
    #allocation2 [shape = 'u8[1024]{0}', space=vmem, size = 0x400, scoped, tag = 'output window, operand 0, single buffered']
    #allocation3 [shape = 's32[1]{0}', space=sflag, size = 0x4, scoped, tag = 'scoped memory for tpu_custom_call.1']
    %9 = vsyncpa [#allocation3], 0
    // Predicated region
    $region2: #{tpu_custom_call.1} parent=1 // pred_check
      _
    $region3: #{tpu_custom_call.1} parent=1 // pred_check_branch
      %11 = sbr.rel (0) target = $region5
    $region4: #{tpu_custom_call.1} parent=1 // pred_region
      _
    $region5: #{tpu_custom_call.1} parent=1 // pred_fallthru
      _
    // Predicated region
    $region6: #{tpu_custom_call.1} parent=1 // pred_check
      _
    $region7: #{tpu_custom_call.1} parent=1 // pred_check_branch
      %13 = sbr.rel (0) target = $region9
    $region8: #{tpu_custom_call.1} parent=1 // pred_region
      _
    $region9: #{tpu_custom_call.1} parent=1 // pred_fallthru
      _
    // Predicated region
    $region10: #{tpu_custom_call.1} parent=1 // pred_check
      _
    $region11: #{tpu_custom_call.1} parent=1 // pred_check_branch
      %15 = sbr.rel (0) target = $region13
    $region12: #{tpu_custom_call.1} parent=1 // pred_region
      _
    $region13: #{tpu_custom_call.1} parent=1 // pred_fallthru
      _
    // Predicated region
    $region14: #{tpu_custom_call.1} parent=1 // pred_check
      _
    $region15: #{tpu_custom_call.1} parent=1 // pred_check_branch
      %17 = sbr.rel (0) target = $region17
    $region16: #{tpu_custom_call.1} parent=1 // pred_region
      _
    $region17: #{tpu_custom_call.1} parent=1 // pred_fallthru
      _
    %v19 = vld [vmem:[%s0] sm:$0xf]
    %v20 = vld [vmem:[%s0 + $0x4] sm:$0x7]
    %v21 = vld [vmem:[%s0 + $0x8] sm:$0xf]
    %v22 = vld [vmem:[%s0 + $0xc] sm:$0x7]
    %v23 = vld [vmem:[%s1] sm:$0xf]
    %v24 = vld [vmem:[%s1 + $0x4] sm:$0xf]
    %v25 = vld [vmem:[%s1 + $0x8] sm:$0xf]
    %v26 = vld [vmem:[%s1 + $0xc] sm:$0xf]
    %v27 = vld [vmem:[%s1 + $0x10] sm:$0xf]
    %v28 = vld [vmem:[%s3] sm:$0xff]
    %v29 = vld [vmem:[%s3 + $0x8] sm:$0x3f]
    %v35 = vunpack.c.l.s4 1966171168
    %v36 = vunpack.c.0.s8 %v35
    %v37 = vlaneseq
    %v38 = vshrl.u32 %v37, 7
    %v39 = vsub.s32 %v36, %v38
    %v40 = vrot.slane %v19, %v39
    %v41 = vcombine.high %v40, %v40
    %v43 = vunpack.c.l.s4 1966171168
    %v44 = vunpack.c.0.s8 %v43
    %v45 = vlaneseq
    %v46 = vshrl.u32 %v45, 7
    %v47 = vsub.s32 %v44, %v46
    %v48 = vrot.slane %v40, %v47
    %v50 = vunpack.c.l.s4 1966171168
    %v51 = vunpack.c.0.s8 %v50
    %v52 = vlaneseq
    %v53 = vshrl.u32 %v52, 7
    %v54 = vsub.s32 %v51, %v53
    %v55 = vrot.slane %v41, %v54
    %v56 = vcombine.high %v48, %v48
    %v57 = vcombine.high %v55, %v55
    %v59 = vunpack.c.l.s4 1966171168
    %v60 = vunpack.c.0.s8 %v59
    %v61 = vlaneseq
    %v62 = vshrl.u32 %v61, 7
    %v63 = vsub.s32 %v60, %v62
    %v64 = vrot.slane %v20, %v63
    %v65 = vcombine.high %v64, %v64
    %v67 = vunpack.c.l.s4 1966171168
    %v68 = vunpack.c.0.s8 %v67
    %v69 = vlaneseq
    %v70 = vshrl.u32 %v69, 7
    %v71 = vsub.s32 %v68, %v70
    %v72 = vrot.slane %v64, %v71
    %v74 = vunpack.c.l.s4 1966171168
    %v75 = vunpack.c.0.s8 %v74
    %v76 = vlaneseq
    %v77 = vshrl.u32 %v76, 7
    %v78 = vsub.s32 %v75, %v77
    %v79 = vrot.slane %v65, %v78
    %v80 = vcombine.high %v72, %v72
    %v82 = vunpack.c.l.s4 1966171168
    %v83 = vunpack.c.0.s8 %v82
    %v84 = vlaneseq
    %v85 = vshrl.u32 %v84, 7
    %v86 = vsub.s32 %v83, %v85
    %v87 = vrot.slane %v21, %v86
    %v88 = vcombine.high %v87, %v87
    %v90 = vunpack.c.l.s4 1966171168
    %v91 = vunpack.c.0.s8 %v90
    %v92 = vlaneseq
    %v93 = vshrl.u32 %v92, 7
    %v94 = vsub.s32 %v91, %v93
    %v95 = vrot.slane %v87, %v94
    %v97 = vunpack.c.l.s4 1966171168
    %v98 = vunpack.c.0.s8 %v97
    %v99 = vlaneseq
    %v100 = vshrl.u32 %v99, 7
    %v101 = vsub.s32 %v98, %v100
    %v102 = vrot.slane %v88, %v101
    %v103 = vcombine.high %v95, %v95
    %v104 = vcombine.high %v102, %v102
    %v106 = vunpack.c.l.s4 1966171168
    %v107 = vunpack.c.0.s8 %v106
    %v108 = vlaneseq
    %v109 = vshrl.u32 %v108, 7
    %v110 = vsub.s32 %v107, %v109
    %v111 = vrot.slane %v22, %v110
    %v112 = vcombine.high %v111, %v111
    %v114 = vunpack.c.l.s4 1966171168
    %v115 = vunpack.c.0.s8 %v114
    %v116 = vlaneseq
    %v117 = vshrl.u32 %v116, 7
    %v118 = vsub.s32 %v115, %v117
    %v119 = vrot.slane %v111, %v118
    %v121 = vunpack.c.l.s4 1966171168
    %v122 = vunpack.c.0.s8 %v121
    %v123 = vlaneseq
    %v124 = vshrl.u32 %v123, 7
    %v125 = vsub.s32 %v122, %v124
    %v126 = vrot.slane %v112, %v125
    %v127 = vcombine.high %v119, %v119
    %v130 = vcombine.high %v28, %v28
    %v132 = vunpack.c.l.s4 1983009808
    %v133 = vunpack.c.0.s8 %v132
    %v134 = vlaneseq
    %v135 = vshrl.u32 %v134, 7
    %v136 = vsub.s32 %v133, %v135
    %v137 = vrot.slane %v28, %v136
    %v139 = vunpack.c.l.s4 1983009808
    %v140 = vunpack.c.0.s8 %v139
    %v141 = vlaneseq
    %v142 = vshrl.u32 %v141, 7
    %v143 = vsub.s32 %v140, %v142
    %v144 = vrot.slane %v130, %v143
    %v145 = vcombine.high %v137, %v137
    %v146 = vcombine.high %v144, %v144
    %v147 = vcombine.high %v29, %v29
    %v149 = vunpack.c.l.s4 1983009808
    %v150 = vunpack.c.0.s8 %v149
    %v151 = vlaneseq
    %v152 = vshrl.u32 %v151, 7
    %v153 = vsub.s32 %v150, %v152
    %v154 = vrot.slane %v29, %v153
    %v156 = vunpack.c.l.s4 1983009808
    %v157 = vunpack.c.0.s8 %v156
    %v158 = vlaneseq
    %v159 = vshrl.u32 %v158, 7
    %v160 = vsub.s32 %v157, %v159
    %v161 = vrot.slane %v147, %v160
    %v162 = vcombine.high %v154, %v154
    %v163 = vcombine.low %v48, %v55
    %v164 = vcombine.low %v56, %v57
    %v165 = vcombine.low %v72, %v79
    %v166 = vcombine.low %v80, %v95
    %v168 = vunpack.c.l.s4 1966171168
    %v169 = vunpack.c.0.s8 %v168
    %v170 = vlaneseq
    %v171 = vshrl.u32 %v170, 7
    %v172 = vsub.s32 %v169, %v171
    %v173 = vrot.slane %v163, %v172
    %v175 = vunpack.c.l.s4 1966171168
    %v176 = vunpack.c.0.s8 %v175
    %v177 = vlaneseq
    %v178 = vshrl.u32 %v177, 7
    %v179 = vsub.s32 %v176, %v178
    %v180 = vrot.slane %v164, %v179
    %v182 = vunpack.c.l.s4 1966171168
    %v183 = vunpack.c.0.s8 %v182
    %v184 = vlaneseq
    %v185 = vshrl.u32 %v184, 7
    %v186 = vsub.s32 %v183, %v185
    %v187 = vrot.slane %v165, %v186
    %v189 = vunpack.c.l.s4 1966171168
    %v190 = vunpack.c.0.s8 %v189
    %v191 = vlaneseq
    %v192 = vshrl.u32 %v191, 7
    %v193 = vsub.s32 %v190, %v192
    %v194 = vrot.slane %v166, %v193
    %v195 = vcombine.low %v173, %v180
    %v196 = vcombine.low %v187, %v194
    %v198 = vunpack.c.l.s4 1966171168
    %v199 = vunpack.c.0.s8 %v198
    %v200 = vlaneseq
    %v201 = vshrl.u32 %v200, 7
    %v202 = vsub.s32 %v199, %v201
    %v203 = vrot.slane %v195, %v202
    %v205 = vunpack.c.l.s4 1966171168
    %v206 = vunpack.c.0.s8 %v205
    %v207 = vlaneseq
    %v208 = vshrl.u32 %v207, 7
    %v209 = vsub.s32 %v206, %v208
    %v210 = vrot.slane %v196, %v209
    %v211 = vcombine.low %v203, %v210
    %v212 = vcombine.low %v102, %v103
    %v213 = vcombine.low %v104, %v119
    %v214 = vcombine.low %v126, %v127
    %v216 = vunpack.c.l.s4 1966171168
    %v217 = vunpack.c.0.s8 %v216
    %v218 = vlaneseq
    %v219 = vshrl.u32 %v218, 7
    %v220 = vsub.s32 %v217, %v219
    %v221 = vrot.slane %v212, %v220
    %v223 = vunpack.c.l.s4 1966171168
    %v224 = vunpack.c.0.s8 %v223
    %v225 = vlaneseq
    %v226 = vshrl.u32 %v225, 7
    %v227 = vsub.s32 %v224, %v226
    %v228 = vrot.slane %v213, %v227
    %v230 = vunpack.c.l.s4 1966171168
    %v231 = vunpack.c.0.s8 %v230
    %v232 = vlaneseq
    %v233 = vshrl.u32 %v232, 7
    %v234 = vsub.s32 %v231, %v233
    %v235 = vrot.slane %v214, %v234
    %v236 = vcombine.low %v221, %v228
    %v238 = vunpack.c.l.s4 1966171168
    %v239 = vunpack.c.0.s8 %v238
    %v240 = vlaneseq
    %v241 = vshrl.u32 %v240, 7
    %v242 = vsub.s32 %v239, %v241
    %v243 = vrot.slane %v236, %v242
    %v245 = vunpack.c.l.s4 1966171168
    %v246 = vunpack.c.0.s8 %v245
    %v247 = vlaneseq
    %v248 = vshrl.u32 %v247, 7
    %v249 = vsub.s32 %v246, %v248
    %v250 = vrot.slane %v235, %v249
    %v251 = vcombine.low %v243, %v250
    %v257 = vunpack.c.l.b16 %v23
    %v258 = vunpack.c.l.b16 %v24
    %v259 = vunpack.c.l.b16 %v25
    %v260 = vunpack.c.l.b16 %v26
    %v261 = vunpack.c.l.b16 %v27
    %v262 = vpack.c.b16 %v258, %v257
    %v263 = vpack.c.b16 %v260, %v259
    %v264 = vpack.c.b16 %v261, %v261
    %v267 = vcombine.low %v137, %v145
    %v268 = vcombine.low %v144, %v146
    %v270 = vunpack.c.l.s4 1983009808
    %v271 = vunpack.c.0.s8 %v270
    %v272 = vlaneseq
    %v273 = vshrl.u32 %v272, 7
    %v274 = vsub.s32 %v271, %v273
    %v275 = vrot.slane %v267, %v274
    %v277 = vunpack.c.l.s4 1983009808
    %v278 = vunpack.c.0.s8 %v277
    %v279 = vlaneseq
    %v280 = vshrl.u32 %v279, 7
    %v281 = vsub.s32 %v278, %v280
    %v282 = vrot.slane %v268, %v281
    %v283 = vcombine.low %v275, %v282
    %v284 = vcombine.low %v154, %v162
    %v285 = vcombine.low %v161, %v137
    %v287 = vunpack.c.l.s4 1983009808
    %v288 = vunpack.c.0.s8 %v287
    %v289 = vlaneseq
    %v290 = vshrl.u32 %v289, 7
    %v291 = vsub.s32 %v288, %v290
    %v292 = vrot.slane %v284, %v291
    %v294 = vunpack.c.l.s4 1983009808
    %v295 = vunpack.c.0.s8 %v294
    %v296 = vlaneseq
    %v297 = vshrl.u32 %v296, 7
    %v298 = vsub.s32 %v295, %v297
    %v299 = vrot.slane %v285, %v298
    %v300 = vcombine.low %v292, %v299
    %v301 = vcombine.low %v145, %v144
    %v302 = vcombine.low %v146, %v154
    %v304 = vunpack.c.l.s4 1983009808
    %v305 = vunpack.c.0.s8 %v304
    %v306 = vlaneseq
    %v307 = vshrl.u32 %v306, 7
    %v308 = vsub.s32 %v305, %v307
    %v309 = vrot.slane %v301, %v308
    %v311 = vunpack.c.l.s4 1983009808
    %v312 = vunpack.c.0.s8 %v311
    %v313 = vlaneseq
    %v314 = vshrl.u32 %v313, 7
    %v315 = vsub.s32 %v312, %v314
    %v316 = vrot.slane %v302, %v315
    %v317 = vcombine.low %v309, %v316
    %v318 = vcombine.low %v162, %v161
    %v320 = vunpack.c.l.s4 1983009808
    %v321 = vunpack.c.0.s8 %v320
    %v322 = vlaneseq
    %v323 = vshrl.u32 %v322, 7
    %v324 = vsub.s32 %v321, %v323
    %v325 = vrot.slane %v318, %v324
    %vm330 = vcmask 326656
    %v332 = vsel %vm330, %v211, 0
    %v335 = vsel %vm330, %v251, 0
    %vm337 = vcmask 1043456
    %v339 = vsel %vm337, %v264, 0
    %341 = vmatprep.subr.bf16.mxu0 0
    %342 = vmatpush1.bf16.msra.mxu0 %v262
    %343 = vmatprep.subr.bf16.mxu0 0
    %344 = vmatpush1.bf16.msra.mxu0 %v263
    %345 = vmatprep.subr.bf16.mxu0 0
    %346 = vmatpush1.bf16.msra.mxu0 %v339
    %347 = vmatprep.subr.bf16.mxu0 0
    %348 = vmatpush1.bf16.msra.mxu0 0
    %349 = vmatprep.subr.bf16.mxu0 0
    %350 = vmatpush1.bf16.msra.mxu0 0
    %351 = vmatprep.subr.bf16.mxu0 0
    %352 = vmatpush1.bf16.msra.mxu0 0
    %353 = vmatprep.subr.bf16.mxu0 0
    %354 = vmatpush1.bf16.msra.mxu0 0
    %355 = vmatprep.subr.bf16.mxu0 0
    %356 = vmatpush1.bf16.msra.mxu0 0
    %357 = vmatprep.subr.bf16.mxu0 0
    %358 = vmatpush1.bf16.msra.mxu0 0
    %359 = vmatprep.subr.bf16.mxu0 0
    %360 = vmatpush1.bf16.msra.mxu0 0
    %361 = vmatprep.subr.bf16.mxu0 0
    %362 = vmatpush1.bf16.msra.mxu0 0
    %363 = vmatprep.subr.bf16.mxu0 0
    %364 = vmatpush1.bf16.msra.mxu0 0
    %365 = vmatprep.subr.bf16.mxu0 0
    %366 = vmatpush1.bf16.msra.mxu0 0
    %367 = vmatprep.subr.bf16.mxu0 0
    %368 = vmatpush1.bf16.msra.mxu0 0
    %369 = vmatprep.subr.bf16.mxu0 0
    %370 = vmatpush1.bf16.msra.mxu0 0
    %371 = vmatprep.subr.bf16.mxu0 0
    %372 = vmatpush1.bf16.msra.mxu0 0
    %373 = vmatprep.mubr.bf16.mxu0 0
    %374 = vmatmul.mubr.bf16.gmra.mrb[0].mxu0 %v332
    %v375 = vpop.f32.mrb[0].mxu0
    %v376 = vadd.f32 %v283, %v375
    %v377 = vpop.f32.mrb[0].mxu0
    %v378 = vpop.f32.mrb[0].mxu0
    %v379 = vadd.f32 %v300, %v378
    %v380 = vpop.f32.mrb[0].mxu0
    %381 = vmatprep.mubr.bf16.mxu0 0
    %382 = vmatmul.mubr.bf16.gmra.mrb[0].mxu0 %v335
    %v383 = vpop.f32.mrb[0].mxu0
    %v384 = vadd.f32 %v317, %v383
    %v385 = vpop.f32.mrb[0].mxu0
    %v386 = vpop.f32.mrb[0].mxu0
    %v387 = vadd.f32 %v325, %v386
    %v388 = vpop.f32.mrb[0].mxu0
    %389 = vdwg.mxu0
    %v394 = vcombine.high %v376, %v376
    %v396 = vunpack.c.l.s4 1983009808
    %v397 = vunpack.c.0.s8 %v396
    %v398 = vlaneseq
    %v399 = vshrl.u32 %v398, 7
    %v400 = vsub.s32 %v397, %v399
    %v401 = vrot.slane %v376, %v400
    %v403 = vunpack.c.l.s4 1983009808
    %v404 = vunpack.c.0.s8 %v403
    %v405 = vlaneseq
    %v406 = vshrl.u32 %v405, 7
    %v407 = vsub.s32 %v404, %v406
    %v408 = vrot.slane %v394, %v407
    %v409 = vcombine.high %v401, %v401
    %v410 = vcombine.high %v408, %v408
    %v411 = vcombine.high %v379, %v379
    %v413 = vunpack.c.l.s4 1983009808
    %v414 = vunpack.c.0.s8 %v413
    %v415 = vlaneseq
    %v416 = vshrl.u32 %v415, 7
    %v417 = vsub.s32 %v414, %v416
    %v418 = vrot.slane %v379, %v417
    %v420 = vunpack.c.l.s4 1983009808
    %v421 = vunpack.c.0.s8 %v420
    %v422 = vlaneseq
    %v423 = vshrl.u32 %v422, 7
    %v424 = vsub.s32 %v421, %v423
    %v425 = vrot.slane %v411, %v424
    %v426 = vcombine.high %v418, %v418
    %v427 = vcombine.high %v425, %v425
    %v428 = vcombine.high %v384, %v384
    %v430 = vunpack.c.l.s4 1983009808
    %v431 = vunpack.c.0.s8 %v430
    %v432 = vlaneseq
    %v433 = vshrl.u32 %v432, 7
    %v434 = vsub.s32 %v431, %v433
    %v435 = vrot.slane %v384, %v434
    %v437 = vunpack.c.l.s4 1983009808
    %v438 = vunpack.c.0.s8 %v437
    %v439 = vlaneseq
    %v440 = vshrl.u32 %v439, 7
    %v441 = vsub.s32 %v438, %v440
    %v442 = vrot.slane %v428, %v441
    %v443 = vcombine.high %v435, %v435
    %v444 = vcombine.high %v442, %v442
    %v446 = vunpack.c.l.s4 1983009808
    %v447 = vunpack.c.0.s8 %v446
    %v448 = vlaneseq
    %v449 = vshrl.u32 %v448, 7
    %v450 = vsub.s32 %v447, %v449
    %v451 = vrot.slane %v387, %v450
    %v452 = vcombine.high %v451, %v451
    %v453 = vcombine.low %v401, %v409
    %v454 = vcombine.low %v408, %v410
    %v456 = vunpack.c.l.s4 1983009808
    %v457 = vunpack.c.0.s8 %v456
    %v458 = vlaneseq
    %v459 = vshrl.u32 %v458, 7
    %v460 = vsub.s32 %v457, %v459
    %v461 = vrot.slane %v453, %v460
    %v463 = vunpack.c.l.s4 1983009808
    %v464 = vunpack.c.0.s8 %v463
    %v465 = vlaneseq
    %v466 = vshrl.u32 %v465, 7
    %v467 = vsub.s32 %v464, %v466
    %v468 = vrot.slane %v454, %v467
    %v469 = vcombine.low %v461, %v468
    %v470 = vcombine.low %v418, %v426
    %v472 = vunpack.c.l.s4 1983009808
    %v473 = vunpack.c.0.s8 %v472
    %v474 = vlaneseq
    %v475 = vshrl.u32 %v474, 7
    %v476 = vsub.s32 %v473, %v475
    %v477 = vrot.slane %v470, %v476
    %v479 = vunpack.c.l.s4 1983009808
    %v480 = vunpack.c.0.s8 %v479
    %v481 = vlaneseq
    %v482 = vshrl.u32 %v481, 7
    %v483 = vsub.s32 %v480, %v482
    %v484 = vrot.slane %v425, %v483
    %v485 = vcombine.low %v477, %v484
    %v486 = vcombine.low %v427, %v435
    %v487 = vcombine.low %v443, %v442
    %v489 = vunpack.c.l.s4 1983009808
    %v490 = vunpack.c.0.s8 %v489
    %v491 = vlaneseq
    %v492 = vshrl.u32 %v491, 7
    %v493 = vsub.s32 %v490, %v492
    %v494 = vrot.slane %v486, %v493
    %v496 = vunpack.c.l.s4 1983009808
    %v497 = vunpack.c.0.s8 %v496
    %v498 = vlaneseq
    %v499 = vshrl.u32 %v498, 7
    %v500 = vsub.s32 %v497, %v499
    %v501 = vrot.slane %v487, %v500
    %v502 = vcombine.low %v494, %v501
    %v503 = vcombine.low %v444, %v451
    %v505 = vunpack.c.l.s4 1983009808
    %v506 = vunpack.c.0.s8 %v505
    %v507 = vlaneseq
    %v508 = vshrl.u32 %v507, 7
    %v509 = vsub.s32 %v506, %v508
    %v510 = vrot.slane %v503, %v509
    %v512 = vunpack.c.l.s4 1983009808
    %v513 = vunpack.c.0.s8 %v512
    %v514 = vlaneseq
    %v515 = vshrl.u32 %v514, 7
    %v516 = vsub.s32 %v513, %v515
    %v517 = vrot.slane %v452, %v516
    %v518 = vcombine.low %v510, %v517
    %vm523 = vcmask 1045504
    %v524 = vsel %vm523, %v485, -inf
    %v525 = vmax.f32 %v469, %v524
    %v526 = vrot.slane %v525, 4
    %v527 = vmax.f32 %v525, %v526
    %v528 = vrot.slane %v527, 2
    %v529 = vmax.f32 %v527, %v528
    %v530 = vrot.slane %v529, 1
    %v531 = vmax.f32 %v529, %v530
    %v532 = vsel %vm523, %v518, -inf
    %v533 = vmax.f32 %v502, %v532
    %v534 = vrot.slane %v533, 4
    %v535 = vmax.f32 %v533, %v534
    %v536 = vrot.slane %v535, 2
    %v537 = vmax.f32 %v535, %v536
    %v538 = vrot.slane %v537, 1
    %v539 = vmax.f32 %v537, %v538
    %v540 = vld [vmem:[%s2] sm:$0x1]
    %v542 = vlaneseq
    %v543 = vshrl.u32 %v542, 7
    %v544 = vsub.s32 0, %v543
    %v545 = vrot.slane %v540, %v544
    %v547 = vadd.f32 %v531, %v545
    %v548 = vadd.f32 %v539, %v545
    %v549 = vmax.f32 %v547, 0.0
    %v550 = vmax.f32 %v548, 0.0
    %v553 = vrot.slane %v550, 7
    %vm554 = vcmask 1041409
    %v555 = vsel %vm554, %v553, %v549
    %557 = vst [vmem:[#allocation2] sm:$0x3] %v555
    // Predicated region
    $region18: #{tpu_custom_call.1} parent=1 // pred_check
      _
    $region19: #{tpu_custom_call.1} parent=1 // pred_check_branch
      %559 = sbr.rel (0) target = $region21
    $region20: #{tpu_custom_call.1} parent=1 // pred_region
      %s561 = ssub.s32 32, 32
      %562 = vsyncadd [#allocation3], %s561
      %s564 = sshll.u32 [#allocation2], 4
      %s565 = int_to_ptr.vmem [resolvable:$true] %s564
      %567 = dma.vmem_to_hbm [thread:$0]  %s565, 32, %s4, [#allocation3]
    $region21: #{tpu_custom_call.1} parent=1 // pred_fallthru
      _
    // Predicated region
    $region22: #{tpu_custom_call.1} parent=1 // pred_check
      _
    $region23: #{tpu_custom_call.1} parent=1 // pred_check_branch
      %569 = sbr.rel (0) target = $region25
    $region24: #{tpu_custom_call.1} parent=1 // pred_region
      %570 = dma.done [#allocation3], 32
    $region25: #{tpu_custom_call.1} parent=1 // pred_fallthru
      _
    %571 = vsyncpa [#allocation3], 1

</llo_original>
